<compile_context>
chip_gen: v7x
topology: tpu7x:2x2x1
jax: 0.10.0
libtpu: 0.0.40
codegen_flags: <defaults>
</compile_context>

<pallas_src>
import functools

import jax
import jax.numpy as jnp
from jax import lax
from jax.experimental import pallas as pl
from jax.experimental.pallas import tpu as pltpu


def _round_up(x, m):
    return ((x + m - 1) // m) * m


def _mlp_kernel(*refs, n_layers, chunk, mxu_dtype):
    """refs = (x_ref, w0, b0, w1, b1, ..., w_{L-1}, b_{L-1}, out_ref).

    x_ref  : (1, C_in, tile_p)   channels on sublanes, pixels on lanes
    w_i    : (C_out_i, C_in_i)   small weight, resident in VMEM (mxu_dtype)
    b_i    : (C_out_i, 1)        f32
    out_ref: (1, C_out_last, tile_p)
    ReLU after every layer except the last (matches nn.Sequential spec).
    """
    x_ref, out_ref = refs[0], refs[-1]
    params = refs[1:-1]

    # Hoist the (tiny) weights / biases out of the pixel-chunk loop: they are
    # loaded once per grid step and reused by every chunk.
    ws = [params[2 * i][...] for i in range(n_layers)]         # (C_out, C_in)
    bs = [params[2 * i + 1][...].astype(jnp.float32)           # (C_out, 1)
          for i in range(n_layers)]

    tile_p = x_ref.shape[-1]
    n_chunks = tile_p // chunk

    def body(c, carry):
        off = c * chunk
        # Cast to the MXU dtype only at the matmul boundary; bias add / ReLU
        # stay f32 so v5e's VPU (no bf16 VALU path) is happy.
        h = x_ref[0, :, pl.ds(off, chunk)].astype(mxu_dtype)   # (C_in, chunk)
        for i in range(n_layers):
            acc = jnp.dot(ws[i], h,
                          preferred_element_type=jnp.float32) + bs[i]
            if i < n_layers - 1:
                acc = jnp.maximum(acc, 0.0)
                h = acc.astype(mxu_dtype)
            else:
                h = acc
        out_ref[0, :, pl.ds(off, chunk)] = h.astype(out_ref.dtype)
        return carry

    # Short, static trip count -> fully unroll for LLO scheduler visibility.
    lax.fori_loop(0, n_chunks, body, 0, unroll=True)


def undine_forward(x_nchw, weights, biases, *, tile_p=8192, chunk=512,
                   mxu_dtype=jnp.bfloat16):
    """Run the UNDINE forward pass.

    x_nchw : (N, nb_wave, H, W) float32
    weights: list of (C_out, C_in) arrays (1x1 conv kernels, spatial dims dropped)
    biases : list of (C_out,) arrays
    returns: (N, nb_tbin, H, W) float32
    """
    n, c_in, h, w = x_nchw.shape
    hw = h * w
    c_out = weights[-1].shape[0]
    n_layers = len(weights)

    # Pixel tile: large to amortize per-grid-step overhead, but never larger
    # than the (128-aligned) pixel count.  No wrapper-side padding: the ragged
    # last tile (if any) is handled by Pallas' masked block read/write, so
    # there is no extra HBM pass for pad or slice.
    tile_p_eff = min(tile_p, _round_up(hw, 128))

    # v7x has 2 TensorCores: make sure the ("parallel","parallel") grid has at
    # least 2 steps so both cores get work.
    if n * pl.cdiv(hw, tile_p_eff) < 2 and hw > 128:
        tile_p_eff = _round_up(pl.cdiv(hw, 2), 128)

    chunk_eff = min(chunk, tile_p_eff)
    if tile_p_eff % chunk_eff != 0:
        chunk_eff = 128  # tile_p_eff is always a multiple of 128

    # NCHW -> (N, C, H*W): pure reshape, no transpose / pad / extra HBM pass.
    x3 = x_nchw.reshape(n, c_in, hw)

    grid = (n, pl.cdiv(hw, tile_p_eff))

    operands = [x3]
    in_specs = [pl.BlockSpec((1, c_in, tile_p_eff), lambda b, p: (b, 0, p))]
    for wgt, bia in zip(weights, biases):
        w2 = wgt.astype(mxu_dtype)           # pre-cast once in the wrapper
        b2 = bia.reshape(-1, 1).astype(jnp.float32)
        operands += [w2, b2]
        in_specs += [
            pl.BlockSpec(w2.shape, lambda b, p: (0, 0)),
            pl.BlockSpec(b2.shape, lambda b, p: (0, 0)),
        ]

    kernel = functools.partial(_mlp_kernel, n_layers=n_layers,
                               chunk=chunk_eff, mxu_dtype=mxu_dtype)

    dsize = jnp.dtype(x_nchw.dtype).itemsize
    wsize = jnp.dtype(mxu_dtype).itemsize
    flops = 2 * n * hw * sum(int(wt.shape[0]) * int(wt.shape[1])
                             for wt in weights)
    bytes_accessed = (
        n * hw * (c_in + c_out) * dsize
        + sum(int(wt.size) * wsize for wt in weights)
        + sum(int(bi.size) * 4 for bi in biases)
    )

    out3 = pl.pallas_call(
        kernel,
        out_shape=jax.ShapeDtypeStruct((n, c_out, hw), x_nchw.dtype),
        grid_spec=pltpu.PrefetchScalarGridSpec(
            num_scalar_prefetch=0,
            grid=grid,
            in_specs=in_specs,
            out_specs=pl.BlockSpec((1, c_out, tile_p_eff),
                                   lambda b, p: (b, 0, p)),
        ),
        compiler_params=pltpu.CompilerParams(
            dimension_semantics=("parallel", "parallel")),
        cost_estimate=pl.CostEstimate(flops=flops, transcendentals=0,
                                      bytes_accessed=bytes_accessed),
    )(*operands)

    # (N, nb_tbin, HW) -> NCHW: pure reshape.
    return out3.reshape(n, c_out, h, w)


def init_params(key, nb_wave, nb_node, nb_tbin, nb_layer):
    """Deterministic synthetic init mirroring the Conv2d shapes of UNDINE.

    Layer dims: nb_wave -> nb_node -> ... -> nb_node -> nb_tbin
    (nb_layer total conv layers; nb_layer-2 hidden convs).
    Weights are stored as (C_out, C_in), i.e. Conv2d's (C_out, C_in, 1, 1)
    with the 1x1 spatial dims dropped.
    """
    dims = [nb_wave] + [nb_node] * (nb_layer - 1) + [nb_tbin]
    weights, biases = [], []
    for i in range(nb_layer):
        c_in, c_out = dims[i], dims[i + 1]
        key, kw, kb = jax.random.split(key, 3)
        bound = 1.0 / jnp.sqrt(c_in)  # PyTorch-style fan_in uniform bound
        weights.append(jax.random.uniform(kw, (c_out, c_in), jnp.float32,
                                          -bound, bound))
        biases.append(jax.random.uniform(kb, (c_out,), jnp.float32,
                                         -bound, bound))
    return weights, biases


def reference_forward(x_nchw, weights, biases):
    """Plain-JAX reference (same math, no Pallas) for a sanity check."""
    n, c, h, w = x_nchw.shape
    a = x_nchw.reshape(n, c, h * w)
    for i, (wgt, bia) in enumerate(zip(weights, biases)):
        a = jnp.einsum("oc,ncp->nop", wgt, a) + bia.reshape(1, -1, 1)
        if i < len(weights) - 1:
            a = jnp.maximum(a, 0.0)
    return a.reshape(n, -1, h, w)


if __name__ == "__main__":
    # options: nb_wave=4, nb_node=32, nb_tbin=8, nb_layer=4
    NB_WAVE, NB_NODE, NB_TBIN, NB_LAYER = 4, 32, 8, 4
    N, H, W = 2, 16, 16

    key = jax.random.PRNGKey(0)
    key, kx = jax.random.split(key)
    x = jax.random.normal(kx, (N, NB_WAVE, H, W), jnp.float32)

    weights, biases = init_params(key, NB_WAVE, NB_NODE, NB_TBIN, NB_LAYER)

    ref = reference_forward(x, weights, biases)

    # Exact-structure check with f32 MXU operands (tight tolerance).
    run_f32 = jax.jit(functools.partial(undine_forward, mxu_dtype=jnp.float32))
    out_f32 = jax.block_until_ready(run_f32(x, weights, biases))
    assert out_f32.shape == (N, NB_TBIN, H, W)
    assert jnp.allclose(out_f32, ref, atol=1e-5, rtol=1e-5)

    # Default (performance) path: bf16 MXU operands, f32 accumulation.
    run = jax.jit(undine_forward)
    out = jax.block_until_ready(run(x, weights, biases))
    assert out.shape == (N, NB_TBIN, H, W)
    assert jnp.allclose(out, ref, atol=5e-2, rtol=5e-2)

    print("KERNEL_OK")
</pallas_src>

<mosaic_0001>
module attributes {stable_mosaic.version = 11 : i64} {
  func.func @_mlp_kernel(%arg0: i32, %arg1: i32, %arg2: memref<1x4x256xf32, #tpu.memory_space<vmem>>, %arg3: memref<32x4xf32, #tpu.memory_space<vmem>>, %arg4: memref<32x1xf32, #tpu.memory_space<vmem>>, %arg5: memref<32x32xf32, #tpu.memory_space<vmem>>, %arg6: memref<32x1xf32, #tpu.memory_space<vmem>>, %arg7: memref<32x32xf32, #tpu.memory_space<vmem>>, %arg8: memref<32x1xf32, #tpu.memory_space<vmem>>, %arg9: memref<8x32xf32, #tpu.memory_space<vmem>>, %arg10: memref<8x1xf32, #tpu.memory_space<vmem>>, %arg11: memref<1x8x256xf32, #tpu.memory_space<vmem>>) attributes {dimension_semantics = [#tpu.dimension_semantics<parallel>, #tpu.dimension_semantics<parallel>], iteration_bounds = array<i64: 2, 1>, scalar_prefetch = 0 : i64, scratch_operands = 0 : i64, tpu.core_type = #tpu.core_type<tc>, window_params = [{transform_indices = @transform_0, window_bounds = array<i64: 1, 4, 256>}, {pipeline_mode = #tpu.pipeline_mode<synchronous>, transform_indices = @transform_1, window_bounds = array<i64: 32, 4>}, {pipeline_mode = #tpu.pipeline_mode<synchronous>, transform_indices = @transform_2, window_bounds = array<i64: 32, 1>}, {pipeline_mode = #tpu.pipeline_mode<synchronous>, transform_indices = @transform_3, window_bounds = array<i64: 32, 32>}, {pipeline_mode = #tpu.pipeline_mode<synchronous>, transform_indices = @transform_4, window_bounds = array<i64: 32, 1>}, {pipeline_mode = #tpu.pipeline_mode<synchronous>, transform_indices = @transform_5, window_bounds = array<i64: 32, 32>}, {pipeline_mode = #tpu.pipeline_mode<synchronous>, transform_indices = @transform_6, window_bounds = array<i64: 32, 1>}, {pipeline_mode = #tpu.pipeline_mode<synchronous>, transform_indices = @transform_7, window_bounds = array<i64: 8, 32>}, {pipeline_mode = #tpu.pipeline_mode<synchronous>, transform_indices = @transform_8, window_bounds = array<i64: 8, 1>}, {transform_indices = @transform_9, window_bounds = array<i64: 1, 8, 256>}]} {
    %c0 = arith.constant 0 : index
    %c0_0 = arith.constant 0 : index
    %0 = vector.load %arg3[%c0, %c0_0] : memref<32x4xf32, #tpu.memory_space<vmem>>, vector<32x4xf32>
    %c0_1 = arith.constant 0 : index
    %c0_2 = arith.constant 0 : index
    %1 = vector.load %arg5[%c0_1, %c0_2] : memref<32x32xf32, #tpu.memory_space<vmem>>, vector<32x32xf32>
    %c0_3 = arith.constant 0 : index
    %c0_4 = arith.constant 0 : index
    %2 = vector.load %arg7[%c0_3, %c0_4] : memref<32x32xf32, #tpu.memory_space<vmem>>, vector<32x32xf32>
    %c0_5 = arith.constant 0 : index
    %c0_6 = arith.constant 0 : index
    %3 = vector.load %arg9[%c0_5, %c0_6] : memref<8x32xf32, #tpu.memory_space<vmem>>, vector<8x32xf32>
    %c0_7 = arith.constant 0 : index
    %c0_8 = arith.constant 0 : index
    %4 = vector.load %arg4[%c0_7, %c0_8] : memref<32x1xf32, #tpu.memory_space<vmem>>, vector<32x1xf32>
    %c0_9 = arith.constant 0 : index
    %c0_10 = arith.constant 0 : index
    %5 = vector.load %arg6[%c0_9, %c0_10] : memref<32x1xf32, #tpu.memory_space<vmem>>, vector<32x1xf32>
    %c0_11 = arith.constant 0 : index
    %c0_12 = arith.constant 0 : index
    %6 = vector.load %arg8[%c0_11, %c0_12] : memref<32x1xf32, #tpu.memory_space<vmem>>, vector<32x1xf32>
    %c0_13 = arith.constant 0 : index
    %c0_14 = arith.constant 0 : index
    %7 = vector.load %arg10[%c0_13, %c0_14] : memref<8x1xf32, #tpu.memory_space<vmem>>, vector<8x1xf32>
    %c0_i32 = arith.constant 0 : i32
    %c256_i32 = arith.constant 256 : i32
    %8 = arith.muli %c0_i32, %c256_i32 : i32
    %c0_15 = arith.constant 0 : index
    %c0_16 = arith.constant 0 : index
    %9 = arith.index_cast %8 : i32 to index
    %10 = vector.load %arg2[%c0_15, %c0_16, %9] : memref<1x4x256xf32, #tpu.memory_space<vmem>>, vector<1x4x256xf32>
    %11 = vector.shape_cast %10 : vector<1x4x256xf32> to vector<4x256xf32>
    %cst = arith.constant dense<0.000000e+00> : vector<32x256xf32>
    %12 = tpu.matmul %0, %11, %cst {dimension_numbers = #tpu.dot_dimension_numbers<[1], [0], [0], [1], [0, 0, 1, 1], [], []>} : vector<32x4xf32>, vector<4x256xf32>, vector<32x256xf32> -> vector<32x256xf32>
    %13 = vector.broadcast %4 : vector<32x1xf32> to vector<32x256xf32>
    %14 = arith.addf %12, %13 : vector<32x256xf32>
    %cst_17 = arith.constant 0.000000e+00 : f32
    %15 = vector.broadcast %cst_17 : f32 to vector<32x256xf32>
    %16 = arith.maximumf %14, %15 : vector<32x256xf32>
    %cst_18 = arith.constant dense<0.000000e+00> : vector<32x256xf32>
    %17 = tpu.matmul %1, %16, %cst_18 {dimension_numbers = #tpu.dot_dimension_numbers<[1], [0], [0], [1], [0, 0, 1, 1], [], []>} : vector<32x32xf32>, vector<32x256xf32>, vector<32x256xf32> -> vector<32x256xf32>
    %18 = vector.broadcast %5 : vector<32x1xf32> to vector<32x256xf32>
    %19 = arith.addf %17, %18 : vector<32x256xf32>
    %cst_19 = arith.constant 0.000000e+00 : f32
    %20 = vector.broadcast %cst_19 : f32 to vector<32x256xf32>
    %21 = arith.maximumf %19, %20 : vector<32x256xf32>
    %cst_20 = arith.constant dense<0.000000e+00> : vector<32x256xf32>
    %22 = tpu.matmul %2, %21, %cst_20 {dimension_numbers = #tpu.dot_dimension_numbers<[1], [0], [0], [1], [0, 0, 1, 1], [], []>} : vector<32x32xf32>, vector<32x256xf32>, vector<32x256xf32> -> vector<32x256xf32>
    %23 = vector.broadcast %6 : vector<32x1xf32> to vector<32x256xf32>
    %24 = arith.addf %22, %23 : vector<32x256xf32>
    %cst_21 = arith.constant 0.000000e+00 : f32
    %25 = vector.broadcast %cst_21 : f32 to vector<32x256xf32>
    %26 = arith.maximumf %24, %25 : vector<32x256xf32>
    %cst_22 = arith.constant dense<0.000000e+00> : vector<8x256xf32>
    %27 = tpu.matmul %3, %26, %cst_22 {dimension_numbers = #tpu.dot_dimension_numbers<[1], [0], [0], [1], [0, 0, 1, 1], [], []>} : vector<8x32xf32>, vector<32x256xf32>, vector<8x256xf32> -> vector<8x256xf32>
    %28 = vector.broadcast %7 : vector<8x1xf32> to vector<8x256xf32>
    %29 = arith.addf %27, %28 : vector<8x256xf32>
    %c0_23 = arith.constant 0 : index
    %c0_24 = arith.constant 0 : index
    %30 = arith.index_cast %8 : i32 to index
    %31 = vector.load %arg11[%c0_23, %c0_24, %30] : memref<1x8x256xf32, #tpu.memory_space<vmem>>, vector<1x8x256xf32>
    %32 = vector.shape_cast %31 : vector<1x8x256xf32> to vector<8x256xf32>
    %33 = vector.shape_cast %29 : vector<8x256xf32> to vector<1x8x256xf32>
    tpu.vector_store %arg11[%c0_23, %c0_24, %30], %33 {strides = array<i32>} : memref<1x8x256xf32, #tpu.memory_space<vmem>>, vector<1x8x256xf32>,
    %c1_i32 = arith.constant 1 : i32
    return
  }
  func.func @transform_0(%arg0: i32, %arg1: i32) -> (i32, i32, i32) {
    %c0_i32 = arith.constant 0 : i32
    %c0_i32_0 = arith.constant 0 : i32
    return %arg0, %c0_i32, %arg1 : i32, i32, i32
  }
  func.func @transform_1(%arg0: i32, %arg1: i32) -> (i32, i32) {
    %c0_i32 = arith.constant 0 : i32
    %c0_i32_0 = arith.constant 0 : i32
    %c0_i32_1 = arith.constant 0 : i32
    return %c0_i32, %c0_i32_0 : i32, i32
  }
  func.func @transform_2(%arg0: i32, %arg1: i32) -> (i32, i32) {
    %c0_i32 = arith.constant 0 : i32
    %c0_i32_0 = arith.constant 0 : i32
    %c0_i32_1 = arith.constant 0 : i32
    return %c0_i32, %c0_i32_0 : i32, i32
  }
  func.func @transform_3(%arg0: i32, %arg1: i32) -> (i32, i32) {
    %c0_i32 = arith.constant 0 : i32
    %c0_i32_0 = arith.constant 0 : i32
    %c0_i32_1 = arith.constant 0 : i32
    return %c0_i32, %c0_i32_0 : i32, i32
  }
  func.func @transform_4(%arg0: i32, %arg1: i32) -> (i32, i32) {
    %c0_i32 = arith.constant 0 : i32
    %c0_i32_0 = arith.constant 0 : i32
    %c0_i32_1 = arith.constant 0 : i32
    return %c0_i32, %c0_i32_0 : i32, i32
  }
  func.func @transform_5(%arg0: i32, %arg1: i32) -> (i32, i32) {
    %c0_i32 = arith.constant 0 : i32
    %c0_i32_0 = arith.constant 0 : i32
    %c0_i32_1 = arith.constant 0 : i32
    return %c0_i32, %c0_i32_0 : i32, i32
  }
  func.func @transform_6(%arg0: i32, %arg1: i32) -> (i32, i32) {
    %c0_i32 = arith.constant 0 : i32
    %c0_i32_0 = arith.constant 0 : i32
    %c0_i32_1 = arith.constant 0 : i32
    return %c0_i32, %c0_i32_0 : i32, i32
  }
  func.func @transform_7(%arg0: i32, %arg1: i32) -> (i32, i32) {
    %c0_i32 = arith.constant 0 : i32
    %c0_i32_0 = arith.constant 0 : i32
    %c0_i32_1 = arith.constant 0 : i32
    return %c0_i32, %c0_i32_0 : i32, i32
  }
  func.func @transform_8(%arg0: i32, %arg1: i32) -> (i32, i32) {
    %c0_i32 = arith.constant 0 : i32
    %c0_i32_0 = arith.constant 0 : i32
    %c0_i32_1 = arith.constant 0 : i32
    return %c0_i32, %c0_i32_0 : i32, i32
  }
  func.func @transform_9(%arg0: i32, %arg1: i32) -> (i32, i32, i32) {
    %c0_i32 = arith.constant 0 : i32
    %c0_i32_0 = arith.constant 0 : i32
    return %arg0, %c0_i32, %arg1 : i32, i32, i32
  }
}

</mosaic_0001>

<llo_original>
// kernel: undine_forward.1
$region0: #{undine_forward.1}
  #allocation0 [shape = 'u32[]', space=smem, size = 0x4, offset = 0x4, fixed_abs, tag = 'smem constant byte address 0x4 - core index']
  #allocation1 [shape = 'u32[144,128]{1,0:T(1,128)}', space=vmem, size = 0x12000, scoped, tag = 'internal scratch']
  %s0 = inlined_call_operand.vmem [shape: f32[2,4,256], index: 0, kind: input, shape index: {}]
  %s1 = inlined_call_operand.vmem [shape: f32[32,4], index: 1, kind: input, shape index: {}]
  %s2 = inlined_call_operand.vmem [shape: f32[32,1], index: 2, kind: input, shape index: {}]
  %s3 = inlined_call_operand.vmem [shape: f32[32,32], index: 3, kind: input, shape index: {}]
  %s4 = inlined_call_operand.vmem [shape: f32[32,1], index: 4, kind: input, shape index: {}]
  %s5 = inlined_call_operand.vmem [shape: f32[32,32], index: 5, kind: input, shape index: {}]
  %s6 = inlined_call_operand.vmem [shape: f32[32,1], index: 6, kind: input, shape index: {}]
  %s7 = inlined_call_operand.vmem [shape: f32[8,32], index: 7, kind: input, shape index: {}]
  %s8 = inlined_call_operand.vmem [shape: f32[8,1], index: 8, kind: input, shape index: {}]
  %s9 = inlined_call_operand.vmem [shape: f32[2,8,256], index: 9, kind: output, shape index: {}]
  %s10 = sld [smem:[#allocation0]]
  $region69: #{undine_forward.1} parent=0
    _
  %s12 = ssub.s32 1, %s10
  %s13 = scalar_select 0, %s12, %s10
  loop: start=0, step=1, limit=4
  $region2: #{undine_forward.1} parent=0 // loop_pre_header
    _
  $region3: #{undine_forward.1} parent=0 // loop_header
    %s15 = sphi 0, %s19
    %p16 = scmp.ge.s32.totalorder %s15, 4
    %s22 = sphi 0, %s34
    %s23 = sphi 0, %s30
    %s24 = sphi 0, %s22
    %s25 = sphi 0, %s23
    %s26 = sphi 0, %s24
    %s27 = sphi 0, %s25
    %s39 = sphi 0, %s41
    %s42 = sphi 0, %s39
    %s43 = sphi 0, %s42
    %s59 = sphi 0, %s43
    %s63 = sphi 0, %s63
    %s65 = sphi 0, %s63
    %s66 = sphi 0, %s65
    %s80 = sphi 0, %s66
    %s84 = sphi 0, %s84
    %s86 = sphi 0, %s84
    %s87 = sphi 0, %s86
    %s101 = sphi 0, %s87
    %s105 = sphi 0, %s105
    %s107 = sphi 0, %s105
    %s108 = sphi 0, %s107
    %s122 = sphi 0, %s108
    %s126 = sphi 0, %s126
    %s128 = sphi 0, %s126
    %s129 = sphi 0, %s128
    %s143 = sphi 0, %s129
    %s147 = sphi 0, %s147
    %s149 = sphi 0, %s147
    %s150 = sphi 0, %s149
    %s164 = sphi 0, %s150
    %s168 = sphi 0, %s168
    %s170 = sphi 0, %s168
    %s171 = sphi 0, %s170
    %s185 = sphi 0, %s171
    %s189 = sphi 0, %s189
    %s191 = sphi 0, %s189
    %s192 = sphi 0, %s191
    %s206 = sphi 0, %s192
    %s210 = sphi 0, %s210
    %s212 = sphi 0, %s210
    %s213 = sphi 0, %s212
    %s227 = sphi 0, %s213
    %s235 = sphi 0, %s237
    %s238 = sphi 0, %s235
    %s239 = sphi 0, %s238
    %s255 = sphi 0, %s239
  $region4: #{undine_forward.1} parent=0 // loop_header_branch
    %18 = sbr.rel (%p16) target = $region8
  $region5: #{undine_forward.1} parent=0 // loop_body
    %s20 = ssub.s32 %s15, 1
    %s21 = ssub.s32 %s15, 2
    %s28 = sadd.s32 1, %s23
    %p29 = scmp.ge.s32.totalorder %s28, 1
    %s30 = scalar_select %p29, 0, %s28
    %s31 = sadd.s32 1, %s22
    %s32 = scalar_select %p29, %s31, %s22
    %p33 = scmp.ge.s32.totalorder %s32, 2
    %s34 = scalar_select %p33, 0, %s32
    %s35 = ssub.s32 %s22, %s34
    %s36 = ssub.s32 %s23, %s30
    %s37 = sor.u32 %s35, %s36
    %p38 = scmp.eq.s32.totalorder %s37, 0
    %s40 = sadd.s32 %s39, 1
    %s41 = scalar_select %p38, %s39, %s40
    %p44 = pneg %p38
    %p45 = scmp.eq.s32.totalorder %s15, 1
    %p46 = por %p44, %p45
    %p47 = scmp.ne.s32.totalorder %s39, %s42
    %p48 = scmp.eq.s32.totalorder %s15, 0
    %p49 = por %p47, %p48
    %p50 = scmp.ne.s32.totalorder %s39, %s42
    %p51 = scmp.eq.s32.totalorder %s20, 1
    %p52 = por %p50, %p51
    %p53 = scmp.ne.s32.totalorder %s42, %s43
    %p54 = scmp.eq.s32.totalorder %s20, 0
    %p55 = por %p53, %p54
    %p56 = scmp.ne.s32.totalorder %s42, %s43
    %p57 = scmp.eq.s32.totalorder %s21, 1
    %p58 = por %p56, %p57
    %p60 = scmp.ne.s32.totalorder %s43, %s59
    %p61 = scmp.eq.s32.totalorder %s21, 0
    %p62 = por %p60, %p61
    %s64 = sadd.s32 %s63, 1
    %p67 = scmp.eq.s32.totalorder %s15, 1
    %p68 = scmp.ne.s32.totalorder %s63, %s65
    %p69 = scmp.eq.s32.totalorder %s15, 0
    %p70 = por %p68, %p69
    %p71 = scmp.ne.s32.totalorder %s63, %s65
    %p72 = scmp.eq.s32.totalorder %s20, 1
    %p73 = por %p71, %p72
    %p74 = scmp.ne.s32.totalorder %s65, %s66
    %p75 = scmp.eq.s32.totalorder %s20, 0
    %p76 = por %p74, %p75
    %p77 = scmp.ne.s32.totalorder %s65, %s66
    %p78 = scmp.eq.s32.totalorder %s21, 1
    %p79 = por %p77, %p78
    %p81 = scmp.ne.s32.totalorder %s66, %s80
    %p82 = scmp.eq.s32.totalorder %s21, 0
    %p83 = por %p81, %p82
    %s85 = sadd.s32 %s84, 1
    %p88 = scmp.eq.s32.totalorder %s15, 1
    %p89 = scmp.ne.s32.totalorder %s84, %s86
    %p90 = scmp.eq.s32.totalorder %s15, 0
    %p91 = por %p89, %p90
    %p92 = scmp.ne.s32.totalorder %s84, %s86
    %p93 = scmp.eq.s32.totalorder %s20, 1
    %p94 = por %p92, %p93
    %p95 = scmp.ne.s32.totalorder %s86, %s87
    %p96 = scmp.eq.s32.totalorder %s20, 0
    %p97 = por %p95, %p96
    %p98 = scmp.ne.s32.totalorder %s86, %s87
    %p99 = scmp.eq.s32.totalorder %s21, 1
    %p100 = por %p98, %p99
    %p102 = scmp.ne.s32.totalorder %s87, %s101
    %p103 = scmp.eq.s32.totalorder %s21, 0
    %p104 = por %p102, %p103
    %s106 = sadd.s32 %s105, 1
    %p109 = scmp.eq.s32.totalorder %s15, 1
    %p110 = scmp.ne.s32.totalorder %s105, %s107
    %p111 = scmp.eq.s32.totalorder %s15, 0
    %p112 = por %p110, %p111
    %p113 = scmp.ne.s32.totalorder %s105, %s107
    %p114 = scmp.eq.s32.totalorder %s20, 1
    %p115 = por %p113, %p114
    %p116 = scmp.ne.s32.totalorder %s107, %s108
    %p117 = scmp.eq.s32.totalorder %s20, 0
    %p118 = por %p116, %p117
    %p119 = scmp.ne.s32.totalorder %s107, %s108
    %p120 = scmp.eq.s32.totalorder %s21, 1
    %p121 = por %p119, %p120
    %p123 = scmp.ne.s32.totalorder %s108, %s122
    %p124 = scmp.eq.s32.totalorder %s21, 0
    %p125 = por %p123, %p124
    %s127 = sadd.s32 %s126, 1
    %p130 = scmp.eq.s32.totalorder %s15, 1
    %p131 = scmp.ne.s32.totalorder %s126, %s128
    %p132 = scmp.eq.s32.totalorder %s15, 0
    %p133 = por %p131, %p132
    %p134 = scmp.ne.s32.totalorder %s126, %s128
    %p135 = scmp.eq.s32.totalorder %s20, 1
    %p136 = por %p134, %p135
    %p137 = scmp.ne.s32.totalorder %s128, %s129
    %p138 = scmp.eq.s32.totalorder %s20, 0
    %p139 = por %p137, %p138
    %p140 = scmp.ne.s32.totalorder %s128, %s129
    %p141 = scmp.eq.s32.totalorder %s21, 1
    %p142 = por %p140, %p141
    %p144 = scmp.ne.s32.totalorder %s129, %s143
    %p145 = scmp.eq.s32.totalorder %s21, 0
    %p146 = por %p144, %p145
    %s148 = sadd.s32 %s147, 1
    %p151 = scmp.eq.s32.totalorder %s15, 1
    %p152 = scmp.ne.s32.totalorder %s147, %s149
    %p153 = scmp.eq.s32.totalorder %s15, 0
    %p154 = por %p152, %p153
    %p155 = scmp.ne.s32.totalorder %s147, %s149
    %p156 = scmp.eq.s32.totalorder %s20, 1
    %p157 = por %p155, %p156
    %p158 = scmp.ne.s32.totalorder %s149, %s150
    %p159 = scmp.eq.s32.totalorder %s20, 0
    %p160 = por %p158, %p159
    %p161 = scmp.ne.s32.totalorder %s149, %s150
    %p162 = scmp.eq.s32.totalorder %s21, 1
    %p163 = por %p161, %p162
    %p165 = scmp.ne.s32.totalorder %s150, %s164
    %p166 = scmp.eq.s32.totalorder %s21, 0
    %p167 = por %p165, %p166
    %s169 = sadd.s32 %s168, 1
    %p172 = scmp.eq.s32.totalorder %s15, 1
    %p173 = scmp.ne.s32.totalorder %s168, %s170
    %p174 = scmp.eq.s32.totalorder %s15, 0
    %p175 = por %p173, %p174
    %p176 = scmp.ne.s32.totalorder %s168, %s170
    %p177 = scmp.eq.s32.totalorder %s20, 1
    %p178 = por %p176, %p177
    %p179 = scmp.ne.s32.totalorder %s170, %s171
    %p180 = scmp.eq.s32.totalorder %s20, 0
    %p181 = por %p179, %p180
    %p182 = scmp.ne.s32.totalorder %s170, %s171
    %p183 = scmp.eq.s32.totalorder %s21, 1
    %p184 = por %p182, %p183
    %p186 = scmp.ne.s32.totalorder %s171, %s185
    %p187 = scmp.eq.s32.totalorder %s21, 0
    %p188 = por %p186, %p187
    %s190 = sadd.s32 %s189, 1
    %p193 = scmp.eq.s32.totalorder %s15, 1
    %p194 = scmp.ne.s32.totalorder %s189, %s191
    %p195 = scmp.eq.s32.totalorder %s15, 0
    %p196 = por %p194, %p195
    %p197 = scmp.ne.s32.totalorder %s189, %s191
    %p198 = scmp.eq.s32.totalorder %s20, 1
    %p199 = por %p197, %p198
    %p200 = scmp.ne.s32.totalorder %s191, %s192
    %p201 = scmp.eq.s32.totalorder %s20, 0
    %p202 = por %p200, %p201
    %p203 = scmp.ne.s32.totalorder %s191, %s192
    %p204 = scmp.eq.s32.totalorder %s21, 1
    %p205 = por %p203, %p204
    %p207 = scmp.ne.s32.totalorder %s192, %s206
    %p208 = scmp.eq.s32.totalorder %s21, 0
    %p209 = por %p207, %p208
    %s211 = sadd.s32 %s210, 1
    %p214 = scmp.eq.s32.totalorder %s15, 1
    %p215 = scmp.ne.s32.totalorder %s210, %s212
    %p216 = scmp.eq.s32.totalorder %s15, 0
    %p217 = por %p215, %p216
    %p218 = scmp.ne.s32.totalorder %s210, %s212
    %p219 = scmp.eq.s32.totalorder %s20, 1
    %p220 = por %p218, %p219
    %p221 = scmp.ne.s32.totalorder %s212, %s213
    %p222 = scmp.eq.s32.totalorder %s20, 0
    %p223 = por %p221, %p222
    %p224 = scmp.ne.s32.totalorder %s212, %s213
    %p225 = scmp.eq.s32.totalorder %s21, 1
    %p226 = por %p224, %p225
    %p228 = scmp.ne.s32.totalorder %s213, %s227
    %p229 = scmp.eq.s32.totalorder %s21, 0
    %p230 = por %p228, %p229
    %s231 = ssub.s32 %s22, %s34
    %s232 = ssub.s32 %s23, %s30
    %s233 = sor.u32 %s231, %s232
    %p234 = scmp.eq.s32.totalorder %s233, 0
    %s236 = sadd.s32 %s235, 1
    %s237 = scalar_select %p234, %s235, %s236
    %p240 = pneg %p234
    %p241 = scmp.eq.s32.totalorder %s15, 1
    %p242 = por %p240, %p241
    %p243 = scmp.ne.s32.totalorder %s235, %s238
    %p244 = scmp.eq.s32.totalorder %s15, 0
    %p245 = por %p243, %p244
    %p246 = scmp.ne.s32.totalorder %s235, %s238
    %p247 = scmp.eq.s32.totalorder %s20, 1
    %p248 = por %p246, %p247
    %p249 = scmp.ne.s32.totalorder %s238, %s239
    %p250 = scmp.eq.s32.totalorder %s20, 0
    %p251 = por %p249, %p250
    %p252 = scmp.ne.s32.totalorder %s238, %s239
    %p253 = scmp.eq.s32.totalorder %s21, 1
    %p254 = por %p252, %p253
    %p256 = scmp.ne.s32.totalorder %s239, %s255
    %p257 = scmp.eq.s32.totalorder %s21, 0
    %p258 = por %p256, %p257
    %p259 = scmp.le.s32.totalorder 1, %s15
    %p260 = scmp.lt.s32.totalorder %s15, 3
    %p261 = pnand %p259, %p260
    %p262 = pneg %p261
    // Predicated region
    $region9: #{undine_forward.1} parent=5 // pred_check
      _
    $region10: #{undine_forward.1} parent=5 // pred_check_branch
      %264 = sbr.rel (%p261) target = $region12
    $region11: #{undine_forward.1} parent=5 // pred_region
      %s265 = ssub.s32 %s15, 1
      // Predicated region
      $region13: #{undine_forward.1} parent=11 // pred_check
        %p266 = pneg %p76
      $region14: #{undine_forward.1} parent=11 // pred_check_branch
        %268 = sbr.rel (%p266) target = $region16
      $region15: #{undine_forward.1} parent=11 // pred_region
        _
      $region16: #{undine_forward.1} parent=11 // pred_fallthru
        _
      // Predicated region
      $region17: #{undine_forward.1} parent=11 // pred_check
        %p269 = pneg %p97
      $region18: #{undine_forward.1} parent=11 // pred_check_branch
        %271 = sbr.rel (%p269) target = $region20
      $region19: #{undine_forward.1} parent=11 // pred_region
        _
      $region20: #{undine_forward.1} parent=11 // pred_fallthru
        _
      // Predicated region
      $region21: #{undine_forward.1} parent=11 // pred_check
        %p272 = pneg %p118
      $region22: #{undine_forward.1} parent=11 // pred_check_branch
        %274 = sbr.rel (%p272) target = $region24
      $region23: #{undine_forward.1} parent=11 // pred_region
        _
      $region24: #{undine_forward.1} parent=11 // pred_fallthru
        _
      // Predicated region
      $region25: #{undine_forward.1} parent=11 // pred_check
        %p275 = pneg %p139
      $region26: #{undine_forward.1} parent=11 // pred_check_branch
        %277 = sbr.rel (%p275) target = $region28
      $region27: #{undine_forward.1} parent=11 // pred_region
        _
      $region28: #{undine_forward.1} parent=11 // pred_fallthru
        _
      // Predicated region
      $region29: #{undine_forward.1} parent=11 // pred_check
        %p278 = pneg %p160
      $region30: #{undine_forward.1} parent=11 // pred_check_branch
        %280 = sbr.rel (%p278) target = $region32
      $region31: #{undine_forward.1} parent=11 // pred_region
        _
      $region32: #{undine_forward.1} parent=11 // pred_fallthru
        _
      // Predicated region
      $region33: #{undine_forward.1} parent=11 // pred_check
        %p281 = pneg %p181
      $region34: #{undine_forward.1} parent=11 // pred_check_branch
        %283 = sbr.rel (%p281) target = $region36
      $region35: #{undine_forward.1} parent=11 // pred_region
        _
      $region36: #{undine_forward.1} parent=11 // pred_fallthru
        _
      // Predicated region
      $region37: #{undine_forward.1} parent=11 // pred_check
        %p284 = pneg %p202
      $region38: #{undine_forward.1} parent=11 // pred_check_branch
        %286 = sbr.rel (%p284) target = $region40
      $region39: #{undine_forward.1} parent=11 // pred_region
        _
      $region40: #{undine_forward.1} parent=11 // pred_fallthru
        _
      // Predicated region
      $region41: #{undine_forward.1} parent=11 // pred_check
        %p287 = pneg %p223
      $region42: #{undine_forward.1} parent=11 // pred_check_branch
        %289 = sbr.rel (%p287) target = $region44
      $region43: #{undine_forward.1} parent=11 // pred_region
        _
      $region44: #{undine_forward.1} parent=11 // pred_fallthru
        _
    $region12: #{undine_forward.1} parent=5 // pred_fallthru
      _
    %p290 = scmp.lt.s32.totalorder %s15, 2
    // Predicated region
    $region45: #{undine_forward.1} parent=5 // pred_check
      %p291 = pneg %p290
    $region46: #{undine_forward.1} parent=5 // pred_check_branch
      %293 = sbr.rel (%p291) target = $region48
    $region47: #{undine_forward.1} parent=5 // pred_region
      // Predicated region
      $region49: #{undine_forward.1} parent=47 // pred_check
        %p294 = pneg %p49
      $region50: #{undine_forward.1} parent=47 // pred_check_branch
        %296 = sbr.rel (%p294) target = $region52
      $region51: #{undine_forward.1} parent=47 // pred_region
        %s297 = smul.u32 2, %s23
        %p298 = scmp.lt.s32.totalorder %s22, 1
        %s299 = scalar_select %p298, %s22, 1
        %p300 = scmp.lt.s32.totalorder %s297, 1
        %s301 = scalar_select %p300, %s297, 1
        %s302 = smul.addr %s299, 2
        %s303 = sadd.s32 %s301, %s302
        %s304 = smul.addr %s303, 4
        %s305 = scalar_lea.vmem %s0, %s304
        %s306 = smul.u32 2, %s23
      $region52: #{undine_forward.1} parent=47 // pred_fallthru
        _
    $region48: #{undine_forward.1} parent=5 // pred_fallthru
      _
    %p307 = scmp.le.s32.totalorder 1, %s15
    %p308 = scmp.lt.s32.totalorder %s15, 3
    %p309 = pnand %p307, %p308
    %p310 = pneg %p309
    // Predicated region
    $region53: #{undine_forward.1} parent=5 // pred_check
      _
    $region54: #{undine_forward.1} parent=5 // pred_check_branch
      %312 = sbr.rel (%p309) target = $region56
    $region55: #{undine_forward.1} parent=5 // pred_region
      %s313 = ssub.s32 %s15, 1
      %s314 = smul.u32 2, %s25
      %p315 = scmp.lt.s32.totalorder %s24, 1
      %s316 = scalar_select %p315, %s24, 1
      %p317 = scmp.lt.s32.totalorder %s314, 1
      %s318 = scalar_select %p317, %s314, 1
      %s319 = smul.addr %s316, 2
      %s320 = sadd.s32 %s318, %s319
      %s321 = smul.addr %s320, 4
      %s322 = scalar_lea.vmem %s0, %s321
      %p323 = pneg %p55
      %p324 = pneg %p52
      %p325 = pneg %p76
      %p326 = pneg %p73
      %p327 = pneg %p97
      %p328 = pneg %p94
      %p329 = pneg %p118
      %p330 = pneg %p115
      %p331 = pneg %p139
      %p332 = pneg %p136
      %p333 = pneg %p160
      %p334 = pneg %p157
      %p335 = pneg %p181
      %p336 = pneg %p178
      %p337 = pneg %p202
      %p338 = pneg %p199
      %p339 = pneg %p223
      %p340 = pneg %p220
      %p341 = pneg %p251
      %p342 = pneg %p248
      %s343 = smul.u32 2, %s25
      %p344 = scmp.lt.s32.totalorder %s24, 1
      %s345 = scalar_select %p344, %s24, 1
      %p346 = scmp.lt.s32.totalorder %s343, 1
      %s347 = scalar_select %p346, %s343, 1
      %s348 = smul.addr %s345, 2
      %s349 = sadd.s32 %s347, %s348
      %s350 = smul.addr %s349, 8
      %s351 = scalar_lea.vmem %s9, %s350
      %s352 = smul.u32 2, %s25
      %p353 = scmp.lt.s32.totalorder %s24, 1
      %s354 = scalar_select %p353, %s24, 1
      %p355 = scmp.lt.s32.totalorder %s352, 1
      %s356 = scalar_select %p355, %s352, 1
      %s357 = smul.addr %s354, 2
      %s358 = sadd.s32 %s356, %s357
      %s359 = smul.addr %s358, 4
      %s360 = scalar_lea.vmem %s0, %s359
      %s361 = smul.u32 2, %s25
      %s362 = smul.u32 2, %s25
      %p363 = scmp.lt.s32.totalorder %s24, 1
      %s364 = scalar_select %p363, %s24, 1
      %p365 = scmp.lt.s32.totalorder %s362, 1
      %s366 = scalar_select %p365, %s362, 1
      %s367 = smul.addr %s364, 2
      %s368 = sadd.s32 %s366, %s367
      %s369 = smul.addr %s368, 8
      %s370 = scalar_lea.vmem %s9, %s369
      %s371 = smul.u32 2, %s25
      %v372 = vld [vmem:[%s1] sm:$0xff]
      %v373 = vld [vmem:[%s1 + $0x8] sm:$0xff]
      %v374 = vld [vmem:[%s1 + $0x10] sm:$0xff]
      %v375 = vld [vmem:[%s1 + $0x18] sm:$0xff]
      %v376 = vld [vmem:[%s3] sm:$0xff]
      %v377 = vld [vmem:[%s3 + $0x8] sm:$0xff]
      %v378 = vld [vmem:[%s3 + $0x10] sm:$0xff]
      %v379 = vld [vmem:[%s3 + $0x18] sm:$0xff]
      %v380 = vld [vmem:[%s5] sm:$0xff]
      %v381 = vld [vmem:[%s5 + $0x8] sm:$0xff]
      %v382 = vld [vmem:[%s5 + $0x10] sm:$0xff]
      %v383 = vld [vmem:[%s5 + $0x18] sm:$0xff]
      %v384 = vld [vmem:[%s7] sm:$0xff]
      %v385 = vld [vmem:[%s2] sm:$0xff]
      %v386 = vld [vmem:[%s2 + $0x8] sm:$0xff]
      %v387 = vld [vmem:[%s2 + $0x10] sm:$0xff]
      %v388 = vld [vmem:[%s2 + $0x18] sm:$0xff]
      %v389 = vld [vmem:[%s4] sm:$0xff]
      %v390 = vld [vmem:[%s4 + $0x8] sm:$0xff]
      %v391 = vld [vmem:[%s4 + $0x10] sm:$0xff]
      %v392 = vld [vmem:[%s4 + $0x18] sm:$0xff]
      %v393 = vld [vmem:[%s6] sm:$0xff]
      %v394 = vld [vmem:[%s6 + $0x8] sm:$0xff]
      %v395 = vld [vmem:[%s6 + $0x10] sm:$0xff]
      %v396 = vld [vmem:[%s6 + $0x18] sm:$0xff]
      %v397 = vld [vmem:[%s8] sm:$0xff]
      %v398 = vld [vmem:[%s360] sm:$0xff]
      %400 = vset.pattern.permute.xlu0 0
      %401 = vperm.xlu0 %400, %v385
      %v402 = vpop.permute.xlu0 %401
      %405 = vset.pattern.permute.xlu0 0
      %406 = vperm.xlu0 %405, %v386
      %v407 = vpop.permute.xlu0 %406
      %410 = vset.pattern.permute.xlu0 0
      %411 = vperm.xlu0 %410, %v387
      %v412 = vpop.permute.xlu0 %411
      %415 = vset.pattern.permute.xlu0 0
      %416 = vperm.xlu0 %415, %v388
      %v417 = vpop.permute.xlu0 %416
      %v420 = vcombine.high %v398, %v398
      %vm421 = vcmask 31744
      %v423 = vsel %vm421, %v372, 0
      %v426 = vsel %vm421, %v373, 0
      %v429 = vsel %vm421, %v374, 0
      %v432 = vsel %vm421, %v375, 0
      %vm434 = vcmask 1043456
      %v435 = vsel %vm434, %v398, 0
      %v437 = vsel %vm434, %v420, 0
      %439 = vmatprep.subr.mxu0 %v437
      %440 = vmatpush1.msra.mxu0 %v435
      %441 = vmatprep.subr.mxu0 0.0
      %442 = vmatpush1.msra.mxu0 0.0
      %443 = vmatprep.subr.mxu0 0.0
      %444 = vmatpush1.msra.mxu0 0.0
      %445 = vmatprep.subr.mxu0 0.0
      %446 = vmatpush1.msra.mxu0 0.0
      %447 = vmatprep.subr.mxu0 0.0
      %448 = vmatpush1.msra.mxu0 0.0
      %449 = vmatprep.subr.mxu0 0.0
      %450 = vmatpush1.msra.mxu0 0.0
      %451 = vmatprep.subr.mxu0 0.0
      %452 = vmatpush1.msra.mxu0 0.0
      %453 = vmatprep.subr.mxu0 0.0
      %454 = vmatpush1.msra.mxu0 0.0
      %455 = vmatprep.subr.mxu0 0.0
      %456 = vmatpush1.msra.mxu0 0.0
      %457 = vmatprep.subr.mxu0 0.0
      %458 = vmatpush1.msra.mxu0 0.0
      %459 = vmatprep.subr.mxu0 0.0
      %460 = vmatpush1.msra.mxu0 0.0
      %461 = vmatprep.subr.mxu0 0.0
      %462 = vmatpush1.msra.mxu0 0.0
      %463 = vmatprep.subr.mxu0 0.0
      %464 = vmatpush1.msra.mxu0 0.0
      %465 = vmatprep.subr.mxu0 0.0
      %466 = vmatpush1.msra.mxu0 0.0
      %467 = vmatprep.subr.mxu0 0.0
      %468 = vmatpush1.msra.mxu0 0.0
      %469 = vmatprep.subr.mxu0 0.0
      %470 = vmatpush1.msra.mxu0 0.0
      %471 = vmatprep.subr.mxu0 0.0
      %472 = vmatpush1.msra.mxu0 0.0
      %473 = vmatprep.subr.mxu0 0.0
      %474 = vmatpush1.msra.mxu0 0.0
      %475 = vmatprep.subr.mxu0 0.0
      %476 = vmatpush1.msra.mxu0 0.0
      %477 = vmatprep.subr.mxu0 0.0
      %478 = vmatpush1.msra.mxu0 0.0
      %479 = vmatprep.subr.mxu0 0.0
      %480 = vmatpush1.msra.mxu0 0.0
      %481 = vmatprep.subr.mxu0 0.0
      %482 = vmatpush1.msra.mxu0 0.0
      %483 = vmatprep.subr.mxu0 0.0
      %484 = vmatpush1.msra.mxu0 0.0
      %485 = vmatprep.subr.mxu0 0.0
      %486 = vmatpush1.msra.mxu0 0.0
      %487 = vmatprep.subr.mxu0 0.0
      %488 = vmatpush1.msra.mxu0 0.0
      %489 = vmatprep.subr.mxu0 0.0
      %490 = vmatpush1.msra.mxu0 0.0
      %491 = vmatprep.subr.mxu0 0.0
      %492 = vmatpush1.msra.mxu0 0.0
      %493 = vmatprep.subr.mxu0 0.0
      %494 = vmatpush1.msra.mxu0 0.0
      %495 = vmatprep.subr.mxu0 0.0
      %496 = vmatpush1.msra.mxu0 0.0
      %497 = vmatprep.subr.mxu0 0.0
      %498 = vmatpush1.msra.mxu0 0.0
      %499 = vmatprep.subr.mxu0 0.0
      %500 = vmatpush1.msra.mxu0 0.0
      %501 = vmatprep.subr.mxu0 0.0
      %502 = vmatpush1.msra.mxu0 0.0
      %503 = vmatprep.mubr.f32.mxu0 0.0
      %504 = vmatmul.mubr.f32.gmra.mrb[0].mxu0 %v423
      %v505 = vpop.f32.mrb[0].mxu0
      %v506 = vadd.f32 %v402, %v505
      %v507 = vpop.f32.mrb[0].mxu0
      %v508 = vadd.f32 %v402, %v507
      %509 = vmatprep.mubr.f32.mxu0 0.0
      %510 = vmatmul.mubr.f32.gmra.mrb[0].mxu0 %v426
      %v511 = vpop.f32.mrb[0].mxu0
      %v512 = vadd.f32 %v407, %v511
      %v513 = vpop.f32.mrb[0].mxu0
      %v514 = vadd.f32 %v407, %v513
      %515 = vmatprep.mubr.f32.mxu0 0.0
      %516 = vmatmul.mubr.f32.gmra.mrb[0].mxu0 %v429
      %v517 = vpop.f32.mrb[0].mxu0
      %v518 = vadd.f32 %v412, %v517
      %v519 = vpop.f32.mrb[0].mxu0
      %v520 = vadd.f32 %v412, %v519
      %521 = vmatprep.mubr.f32.mxu0 0.0
      %522 = vmatmul.mubr.f32.gmra.mrb[0].mxu0 %v432
      %v523 = vpop.f32.mrb[0].mxu0
      %v524 = vadd.f32 %v417, %v523
      %v525 = vpop.f32.mrb[0].mxu0
      %v526 = vadd.f32 %v417, %v525
      %527 = vdwg.mxu0
      %v528 = vmax.f32 %v506, 0.0
      %v529 = vmax.f32 %v508, 0.0
      %v530 = vmax.f32 %v512, 0.0
      %v531 = vmax.f32 %v514, 0.0
      %v532 = vmax.f32 %v518, 0.0
      %v533 = vmax.f32 %v520, 0.0
      %v534 = vmax.f32 %v524, 0.0
      %v535 = vmax.f32 %v526, 0.0
      %537 = vset.pattern.permute.xlu0 0
      %538 = vperm.xlu0 %537, %v389
      %v539 = vpop.permute.xlu0 %538
      %542 = vset.pattern.permute.xlu0 0
      %543 = vperm.xlu0 %542, %v390
      %v544 = vpop.permute.xlu0 %543
      %547 = vset.pattern.permute.xlu0 0
      %548 = vperm.xlu0 %547, %v391
      %v549 = vpop.permute.xlu0 %548
      %552 = vset.pattern.permute.xlu0 0
      %553 = vperm.xlu0 %552, %v392
      %v554 = vpop.permute.xlu0 %553
      %vm556 = vcmask 261120
      %v558 = vsel %vm556, %v376, 0
      %v561 = vsel %vm556, %v377, 0
      %v564 = vsel %vm556, %v378, 0
      %v567 = vsel %vm556, %v379, 0
      %569 = vmatprep.subr.mxu0 %v529
      %570 = vmatpush1.msra.mxu0 %v528
      %571 = vmatprep.subr.mxu0 %v531
      %572 = vmatpush1.msra.mxu0 %v530
      %573 = vmatprep.subr.mxu0 %v533
      %574 = vmatpush1.msra.mxu0 %v532
      %575 = vmatprep.subr.mxu0 %v535
      %576 = vmatpush1.msra.mxu0 %v534
      %577 = vmatprep.subr.mxu0 0.0
      %578 = vmatpush1.msra.mxu0 0.0
      %579 = vmatprep.subr.mxu0 0.0
      %580 = vmatpush1.msra.mxu0 0.0
      %581 = vmatprep.subr.mxu0 0.0
      %582 = vmatpush1.msra.mxu0 0.0
      %583 = vmatprep.subr.mxu0 0.0
      %584 = vmatpush1.msra.mxu0 0.0
      %585 = vmatprep.subr.mxu0 0.0
      %586 = vmatpush1.msra.mxu0 0.0
      %587 = vmatprep.subr.mxu0 0.0
      %588 = vmatpush1.msra.mxu0 0.0
      %589 = vmatprep.subr.mxu0 0.0
      %590 = vmatpush1.msra.mxu0 0.0
      %591 = vmatprep.subr.mxu0 0.0
      %592 = vmatpush1.msra.mxu0 0.0
      %593 = vmatprep.subr.mxu0 0.0
      %594 = vmatpush1.msra.mxu0 0.0
      %595 = vmatprep.subr.mxu0 0.0
      %596 = vmatpush1.msra.mxu0 0.0
      %597 = vmatprep.subr.mxu0 0.0
      %598 = vmatpush1.msra.mxu0 0.0
      %599 = vmatprep.subr.mxu0 0.0
      %600 = vmatpush1.msra.mxu0 0.0
      %601 = vmatprep.subr.mxu0 0.0
      %602 = vmatpush1.msra.mxu0 0.0
      %603 = vmatprep.subr.mxu0 0.0
      %604 = vmatpush1.msra.mxu0 0.0
      %605 = vmatprep.subr.mxu0 0.0
      %606 = vmatpush1.msra.mxu0 0.0
      %607 = vmatprep.subr.mxu0 0.0
      %608 = vmatpush1.msra.mxu0 0.0
      %609 = vmatprep.subr.mxu0 0.0
      %610 = vmatpush1.msra.mxu0 0.0
      %611 = vmatprep.subr.mxu0 0.0
      %612 = vmatpush1.msra.mxu0 0.0
      %613 = vmatprep.subr.mxu0 0.0
      %614 = vmatpush1.msra.mxu0 0.0
      %615 = vmatprep.subr.mxu0 0.0
      %616 = vmatpush1.msra.mxu0 0.0
      %617 = vmatprep.subr.mxu0 0.0
      %618 = vmatpush1.msra.mxu0 0.0
      %619 = vmatprep.subr.mxu0 0.0
      %620 = vmatpush1.msra.mxu0 0.0
      %621 = vmatprep.subr.mxu0 0.0
      %622 = vmatpush1.msra.mxu0 0.0
      %623 = vmatprep.subr.mxu0 0.0
      %624 = vmatpush1.msra.mxu0 0.0
      %625 = vmatprep.subr.mxu0 0.0
      %626 = vmatpush1.msra.mxu0 0.0
      %627 = vmatprep.subr.mxu0 0.0
      %628 = vmatpush1.msra.mxu0 0.0
      %629 = vmatprep.subr.mxu0 0.0
      %630 = vmatpush1.msra.mxu0 0.0
      %631 = vmatprep.subr.mxu0 0.0
      %632 = vmatpush1.msra.mxu0 0.0
      %633 = vmatprep.mubr.f32.mxu0 0.0
      %634 = vmatmul.mubr.f32.gmra.mrb[0].mxu0 %v558
      %v635 = vpop.f32.mrb[0].mxu0
      %v636 = vadd.f32 %v539, %v635
      %v637 = vpop.f32.mrb[0].mxu0
      %v638 = vadd.f32 %v539, %v637
      %639 = vmatprep.mubr.f32.mxu0 0.0
      %640 = vmatmul.mubr.f32.gmra.mrb[0].mxu0 %v561
      %v641 = vpop.f32.mrb[0].mxu0
      %v642 = vadd.f32 %v544, %v641
      %v643 = vpop.f32.mrb[0].mxu0
      %v644 = vadd.f32 %v544, %v643
      %645 = vmatprep.mubr.f32.mxu0 0.0
      %646 = vmatmul.mubr.f32.gmra.mrb[0].mxu0 %v564
      %v647 = vpop.f32.mrb[0].mxu0
      %v648 = vadd.f32 %v549, %v647
      %v649 = vpop.f32.mrb[0].mxu0
      %v650 = vadd.f32 %v549, %v649
      %651 = vmatprep.mubr.f32.mxu0 0.0
      %652 = vmatmul.mubr.f32.gmra.mrb[0].mxu0 %v567
      %v653 = vpop.f32.mrb[0].mxu0
      %v654 = vadd.f32 %v554, %v653
      %v655 = vpop.f32.mrb[0].mxu0
      %v656 = vadd.f32 %v554, %v655
      %657 = vdwg.mxu0
      %v658 = vmax.f32 %v636, 0.0
      %v659 = vmax.f32 %v638, 0.0
      %v660 = vmax.f32 %v642, 0.0
      %v661 = vmax.f32 %v644, 0.0
      %v662 = vmax.f32 %v648, 0.0
      %v663 = vmax.f32 %v650, 0.0
      %v664 = vmax.f32 %v654, 0.0
      %v665 = vmax.f32 %v656, 0.0
      %667 = vset.pattern.permute.xlu0 0
      %668 = vperm.xlu0 %667, %v393
      %v669 = vpop.permute.xlu0 %668
      %672 = vset.pattern.permute.xlu0 0
      %673 = vperm.xlu0 %672, %v394
      %v674 = vpop.permute.xlu0 %673
      %677 = vset.pattern.permute.xlu0 0
      %678 = vperm.xlu0 %677, %v395
      %v679 = vpop.permute.xlu0 %678
      %682 = vset.pattern.permute.xlu0 0
      %683 = vperm.xlu0 %682, %v396
      %v684 = vpop.permute.xlu0 %683
      %v687 = vsel %vm556, %v380, 0
      %v690 = vsel %vm556, %v381, 0
      %v693 = vsel %vm556, %v382, 0
      %v696 = vsel %vm556, %v383, 0
      %698 = vmatprep.subr.mxu0 %v659
      %699 = vmatpush1.msra.mxu0 %v658
      %700 = vmatprep.subr.mxu0 %v661
      %701 = vmatpush1.msra.mxu0 %v660
      %702 = vmatprep.subr.mxu0 %v663
      %703 = vmatpush1.msra.mxu0 %v662
      %704 = vmatprep.subr.mxu0 %v665
      %705 = vmatpush1.msra.mxu0 %v664
      %706 = vmatprep.subr.mxu0 0.0
      %707 = vmatpush1.msra.mxu0 0.0
      %708 = vmatprep.subr.mxu0 0.0
      %709 = vmatpush1.msra.mxu0 0.0
      %710 = vmatprep.subr.mxu0 0.0
      %711 = vmatpush1.msra.mxu0 0.0
      %712 = vmatprep.subr.mxu0 0.0
      %713 = vmatpush1.msra.mxu0 0.0
      %714 = vmatprep.subr.mxu0 0.0
      %715 = vmatpush1.msra.mxu0 0.0
      %716 = vmatprep.subr.mxu0 0.0
      %717 = vmatpush1.msra.mxu0 0.0
      %718 = vmatprep.subr.mxu0 0.0
      %719 = vmatpush1.msra.mxu0 0.0
      %720 = vmatprep.subr.mxu0 0.0
      %721 = vmatpush1.msra.mxu0 0.0
      %722 = vmatprep.subr.mxu0 0.0
      %723 = vmatpush1.msra.mxu0 0.0
      %724 = vmatprep.subr.mxu0 0.0
      %725 = vmatpush1.msra.mxu0 0.0
      %726 = vmatprep.subr.mxu0 0.0
      %727 = vmatpush1.msra.mxu0 0.0
      %728 = vmatprep.subr.mxu0 0.0
      %729 = vmatpush1.msra.mxu0 0.0
      %730 = vmatprep.subr.mxu0 0.0
      %731 = vmatpush1.msra.mxu0 0.0
      %732 = vmatprep.subr.mxu0 0.0
      %733 = vmatpush1.msra.mxu0 0.0
      %734 = vmatprep.subr.mxu0 0.0
      %735 = vmatpush1.msra.mxu0 0.0
      %736 = vmatprep.subr.mxu0 0.0
      %737 = vmatpush1.msra.mxu0 0.0
      %738 = vmatprep.subr.mxu0 0.0
      %739 = vmatpush1.msra.mxu0 0.0
      %740 = vmatprep.subr.mxu0 0.0
      %741 = vmatpush1.msra.mxu0 0.0
      %742 = vmatprep.subr.mxu0 0.0
      %743 = vmatpush1.msra.mxu0 0.0
      %744 = vmatprep.subr.mxu0 0.0
      %745 = vmatpush1.msra.mxu0 0.0
      %746 = vmatprep.subr.mxu0 0.0
      %747 = vmatpush1.msra.mxu0 0.0
      %748 = vmatprep.subr.mxu0 0.0
      %749 = vmatpush1.msra.mxu0 0.0
      %750 = vmatprep.subr.mxu0 0.0
      %751 = vmatpush1.msra.mxu0 0.0
      %752 = vmatprep.subr.mxu0 0.0
      %753 = vmatpush1.msra.mxu0 0.0
      %754 = vmatprep.subr.mxu0 0.0
      %755 = vmatpush1.msra.mxu0 0.0
      %756 = vmatprep.subr.mxu0 0.0
      %757 = vmatpush1.msra.mxu0 0.0
      %758 = vmatprep.subr.mxu0 0.0
      %759 = vmatpush1.msra.mxu0 0.0
      %760 = vmatprep.subr.mxu0 0.0
      %761 = vmatpush1.msra.mxu0 0.0
      %762 = vmatprep.mubr.f32.mxu0 0.0
      %763 = vmatmul.mubr.f32.gmra.mrb[0].mxu0 %v687
      %v764 = vpop.f32.mrb[0].mxu0
      %v765 = vadd.f32 %v669, %v764
      %v766 = vpop.f32.mrb[0].mxu0
      %v767 = vadd.f32 %v669, %v766
      %768 = vmatprep.mubr.f32.mxu0 0.0
      %769 = vmatmul.mubr.f32.gmra.mrb[0].mxu0 %v690
      %v770 = vpop.f32.mrb[0].mxu0
      %v771 = vadd.f32 %v674, %v770
      %v772 = vpop.f32.mrb[0].mxu0
      %v773 = vadd.f32 %v674, %v772
      %774 = vmatprep.mubr.f32.mxu0 0.0
      %775 = vmatmul.mubr.f32.gmra.mrb[0].mxu0 %v693
      %v776 = vpop.f32.mrb[0].mxu0
      %v777 = vadd.f32 %v679, %v776
      %v778 = vpop.f32.mrb[0].mxu0
      %v779 = vadd.f32 %v679, %v778
      %780 = vmatprep.mubr.f32.mxu0 0.0
      %781 = vmatmul.mubr.f32.gmra.mrb[0].mxu0 %v696
      %v782 = vpop.f32.mrb[0].mxu0
      %v783 = vadd.f32 %v684, %v782
      %v784 = vpop.f32.mrb[0].mxu0
      %v785 = vadd.f32 %v684, %v784
      %786 = vdwg.mxu0
      %v787 = vmax.f32 %v765, 0.0
      %v788 = vmax.f32 %v767, 0.0
      %v789 = vmax.f32 %v771, 0.0
      %v790 = vmax.f32 %v773, 0.0
      %v791 = vmax.f32 %v777, 0.0
      %v792 = vmax.f32 %v779, 0.0
      %v793 = vmax.f32 %v783, 0.0
      %v794 = vmax.f32 %v785, 0.0
      %796 = vset.pattern.permute.xlu0 0
      %797 = vperm.xlu0 %796, %v397
      %v798 = vpop.permute.xlu0 %797
      %v801 = vsel %vm556, %v384, 0
      %803 = vmatprep.subr.mxu0 %v788
      %804 = vmatpush1.msra.mxu0 %v787
      %805 = vmatprep.subr.mxu0 %v790
      %806 = vmatpush1.msra.mxu0 %v789
      %807 = vmatprep.subr.mxu0 %v792
      %808 = vmatpush1.msra.mxu0 %v791
      %809 = vmatprep.subr.mxu0 %v794
      %810 = vmatpush1.msra.mxu0 %v793
      %811 = vmatprep.subr.mxu0 0.0
      %812 = vmatpush1.msra.mxu0 0.0
      %813 = vmatprep.subr.mxu0 0.0
      %814 = vmatpush1.msra.mxu0 0.0
      %815 = vmatprep.subr.mxu0 0.0
      %816 = vmatpush1.msra.mxu0 0.0
      %817 = vmatprep.subr.mxu0 0.0
      %818 = vmatpush1.msra.mxu0 0.0
      %819 = vmatprep.subr.mxu0 0.0
      %820 = vmatpush1.msra.mxu0 0.0
      %821 = vmatprep.subr.mxu0 0.0
      %822 = vmatpush1.msra.mxu0 0.0
      %823 = vmatprep.subr.mxu0 0.0
      %824 = vmatpush1.msra.mxu0 0.0
      %825 = vmatprep.subr.mxu0 0.0
      %826 = vmatpush1.msra.mxu0 0.0
      %827 = vmatprep.subr.mxu0 0.0
      %828 = vmatpush1.msra.mxu0 0.0
      %829 = vmatprep.subr.mxu0 0.0
      %830 = vmatpush1.msra.mxu0 0.0
      %831 = vmatprep.subr.mxu0 0.0
      %832 = vmatpush1.msra.mxu0 0.0
      %833 = vmatprep.subr.mxu0 0.0
      %834 = vmatpush1.msra.mxu0 0.0
      %835 = vmatprep.subr.mxu0 0.0
      %836 = vmatpush1.msra.mxu0 0.0
      %837 = vmatprep.subr.mxu0 0.0
      %838 = vmatpush1.msra.mxu0 0.0
      %839 = vmatprep.subr.mxu0 0.0
      %840 = vmatpush1.msra.mxu0 0.0
      %841 = vmatprep.subr.mxu0 0.0
      %842 = vmatpush1.msra.mxu0 0.0
      %843 = vmatprep.subr.mxu0 0.0
      %844 = vmatpush1.msra.mxu0 0.0
      %845 = vmatprep.subr.mxu0 0.0
      %846 = vmatpush1.msra.mxu0 0.0
      %847 = vmatprep.subr.mxu0 0.0
      %848 = vmatpush1.msra.mxu0 0.0
      %849 = vmatprep.subr.mxu0 0.0
      %850 = vmatpush1.msra.mxu0 0.0
      %851 = vmatprep.subr.mxu0 0.0
      %852 = vmatpush1.msra.mxu0 0.0
      %853 = vmatprep.subr.mxu0 0.0
      %854 = vmatpush1.msra.mxu0 0.0
      %855 = vmatprep.subr.mxu0 0.0
      %856 = vmatpush1.msra.mxu0 0.0
      %857 = vmatprep.subr.mxu0 0.0
      %858 = vmatpush1.msra.mxu0 0.0
      %859 = vmatprep.subr.mxu0 0.0
      %860 = vmatpush1.msra.mxu0 0.0
      %861 = vmatprep.subr.mxu0 0.0
      %862 = vmatpush1.msra.mxu0 0.0
      %863 = vmatprep.subr.mxu0 0.0
      %864 = vmatpush1.msra.mxu0 0.0
      %865 = vmatprep.subr.mxu0 0.0
      %866 = vmatpush1.msra.mxu0 0.0
      %867 = vmatprep.mubr.f32.mxu0 0.0
      %868 = vmatmul.mubr.f32.gmra.mrb[0].mxu0 %v801
      %v869 = vpop.f32.mrb[0].mxu0
      %v870 = vadd.f32 %v798, %v869
      %v871 = vpop.f32.mrb[0].mxu0
      %v872 = vadd.f32 %v798, %v871
      %873 = vdwg.mxu0
      %874 = vst [vmem:[%s370] sm:$0xff] %v870
      %875 = vst [vmem:[%s370 + $0x8] sm:$0xff] %v872
      %s876 = smul.u32 2, %s25
      %p877 = scmp.lt.s32.totalorder %s24, 1
      %s878 = scalar_select %p877, %s24, 1
      %p879 = scmp.lt.s32.totalorder %s876, 1
      %s880 = scalar_select %p879, %s876, 1
      %s881 = smul.addr %s878, 2
      %s882 = sadd.s32 %s880, %s881
      %s883 = smul.addr %s882, 8
      %s884 = scalar_lea.vmem %s9, %s883
      // Predicated region
      $region57: #{undine_forward.1} parent=55 // pred_check
        %p885 = pneg %p248
      $region58: #{undine_forward.1} parent=55 // pred_check_branch
        %887 = sbr.rel (%p885) target = $region60
      $region59: #{undine_forward.1} parent=55 // pred_region
        %s888 = smul.u32 2, %s25
      $region60: #{undine_forward.1} parent=55 // pred_fallthru
        _
    $region56: #{undine_forward.1} parent=5 // pred_fallthru
      _
    %p889 = scmp.le.s32.totalorder 2, %s15
    // Predicated region
    $region61: #{undine_forward.1} parent=5 // pred_check
      %p890 = pneg %p889
    $region62: #{undine_forward.1} parent=5 // pred_check_branch
      %892 = sbr.rel (%p890) target = $region64
    $region63: #{undine_forward.1} parent=5 // pred_region
      %s893 = ssub.s32 %s15, 2
      // Predicated region
      $region65: #{undine_forward.1} parent=63 // pred_check
        %p894 = pneg %p254
      $region66: #{undine_forward.1} parent=63 // pred_check_branch
        %896 = sbr.rel (%p894) target = $region68
      $region67: #{undine_forward.1} parent=63 // pred_region
        %s897 = smul.u32 2, %s27
        %p898 = scmp.lt.s32.totalorder %s26, 1
        %s899 = scalar_select %p898, %s26, 1
        %p900 = scmp.lt.s32.totalorder %s897, 1
        %s901 = scalar_select %p900, %s897, 1
        %s902 = smul.addr %s899, 2
        %s903 = sadd.s32 %s901, %s902
        %s904 = smul.addr %s903, 8
        %s905 = scalar_lea.vmem %s9, %s904
      $region68: #{undine_forward.1} parent=63 // pred_fallthru
        _
    $region64: #{undine_forward.1} parent=5 // pred_fallthru
      _
  $region6: #{undine_forward.1} parent=0 // loop_footer
    %s19 = sadd.s32 1, %s15
  $region7: #{undine_forward.1} parent=0 // loop_footer_branch
    %14 = sbr.rel target = $region3
  $region8: #{undine_forward.1} parent=0 // loop_exit
    _

</llo_original>
